<compile_context>
chip_gen: v5e
topology: v5e:2x2
jax: 0.10.0
libtpu: 0.0.40
codegen_flags: <defaults>
</compile_context>

<pallas_src>
import functools

import jax
import jax.numpy as jnp
from jax import lax
from jax.experimental import pallas as pl
from jax.experimental.pallas import tpu as pltpu


def _round_up(x, m):
    return ((x + m - 1) // m) * m


def _cdiv(a, b):
    return (a + b - 1) // b


# ---------------------------------------------------------------------------
# Path 1: resident-table one-hot matmul (small vocabularies)
# ---------------------------------------------------------------------------

def _matmul_kernel(lang_ref, tok_ref, tab_ref, out_ref):
    # lang_ref : SMEM (1,) int32  scalar prefetch (consumed by the index_map only)
    # tok_ref  : VMEM (TN, 1) int32  tile of flattened token ids
    # tab_ref  : VMEM (V, E)         selected language's table (lang dim squeezed)
    # out_ref  : VMEM (TN, E)
    del lang_ref
    tok = tok_ref[...]                                  # (TN, 1) int32
    table = tab_ref[...]                                # (V, E)
    tn, v = tok.shape[0], table.shape[0]
    # one-hot with rows=tokens, lanes=vocab: feeds the MXU with no transpose.
    # Compare is int32 (v5e has no bf16 VPU); 0/1 are exact in any float dtype.
    viota = lax.broadcasted_iota(jnp.int32, (tn, v), 1)
    onehot = (viota == tok).astype(table.dtype)         # (TN, V)
    out = lax.dot_general(onehot, table,
                          dimension_numbers=(((1,), (0,)), ((), ())),
                          preferred_element_type=jnp.float32)   # (TN, E) f32
    out_ref[...] = out.astype(out_ref.dtype)


# ---------------------------------------------------------------------------
# Path 2: HBM row-gather (large vocabularies)
# ---------------------------------------------------------------------------

def _gather_kernel(lang_ref, tok_ref, tab_hbm, out_ref, stage, sem, *,
                   tile_n, n_out):
    # lang_ref : SMEM (1,)  int32      selected language
    # tok_ref  : SMEM (Np,) int32      flattened token ids (scalar prefetch)
    # tab_hbm  : HBM  (L, Vmax, Ew)    full stacked table (never copied whole)
    # out_ref  : VMEM (TN, Ew)         output tile
    # stage    : VMEM (2, TN, Ew)      DMA staging, double-buffered across steps
    # sem      : DMA semaphores (n_out,)
    i = pl.program_id(0)
    lang = lang_ref[0]
    base = i * tile_n
    slot = i % 2

    def issue(t):
        tok = tok_ref[base + t]
        pltpu.make_async_copy(tab_hbm.at[lang, tok], stage.at[slot, t],
                              sem.at[t % n_out]).start()

    # prime up to n_out outstanding row DMAs
    for t in range(min(n_out, tile_n)):
        issue(t)

    @pl.loop(0, tile_n)
    def _(t):
        # wait row t (same sem slot / byte count as its start), then keep the
        # pipeline full by issuing row t + n_out
        pltpu.make_async_copy(tab_hbm.at[lang, 0], stage.at[slot, t],
                              sem.at[t % n_out]).wait()

        @pl.when(t + n_out < tile_n)
        def _():
            issue(t + n_out)

    # one dense store of the fully gathered tile
    out_ref[...] = stage[slot]


# ---------------------------------------------------------------------------
# VMEM accounting / device info
# ---------------------------------------------------------------------------

def _device_info():
    """Returns (vmem_capacity_bytes, min_token_tiles, is_v5e) with safe fallbacks."""
    vmem_cap = 128 * 1024 * 1024
    min_tiles = 1
    is_v5e = False
    try:
        vmem_cap = int(pltpu.get_tpu_info().vmem_capacity_bytes)
    except Exception:
        pass
    try:
        kind = jax.devices()[0].device_kind.lower()
        if "v7" in kind:
            min_tiles = 2                                # 2 TensorCores per chip
            vmem_cap = min(vmem_cap, 64 * 1024 * 1024)
        if "v5" in kind and ("lite" in kind or "5e" in kind):
            is_v5e = True
    except Exception:
        pass
    return vmem_cap, min_tiles, is_v5e


def _table_vmem_bytes(v, e, itemsize):
    # single resident buffer (the table BlockSpec uses pl.Buffered(1))
    return _round_up(v, 8) * _round_up(e, 128) * itemsize


def _matmul_tile_vmem_bytes(tn, v, e, itemsize):
    er, vr = _round_up(e, 128), _round_up(v, 8)
    onehot = tn * vr * itemsize                   # live (TN, V) one-hot
    acc_f32 = tn * er * 4                         # f32 MXU result before the cast
    out_bufs = 2 * tn * er * itemsize             # double-buffered output tile
    tok_bufs = 2 * _cdiv(tn, 8) * 8 * 128 * 4     # (TN,1) i32 pads to 128 lanes
    return onehot + acc_f32 + out_bufs + tok_bufs


# ---------------------------------------------------------------------------
# Wrappers
# ---------------------------------------------------------------------------

def _forward_matmul(tokens, tables, lang_arr, N, Vmax, E, itemsize,
                    vmem_budget, vmem_ceiling, min_tiles, table_resident):
    dtype = tables.dtype
    # Largest token tile whose working set fits next to the resident table.
    TN = min(2048, _round_up(max(N, 1), 8))
    while TN > 8 and (table_resident
                      + _matmul_tile_vmem_bytes(TN, Vmax, E, itemsize)) > vmem_budget:
        TN = max(8, _round_up(TN // 2, 8))
    # v7x: 2 TensorCores -> make sure the "parallel" token axis has >= 2 tiles.
    while min_tiles > 1 and TN > 8 and _cdiv(N, TN) < min_tiles:
        TN = max(8, _round_up(TN // 2, 8))
    Np = _round_up(max(N, 1), TN)
    G = Np // TN

    tok_col = jnp.zeros((Np, 1), jnp.int32).at[:N, 0].set(
        tokens.reshape(N).astype(jnp.int32))

    vmem_est = table_resident + _matmul_tile_vmem_bytes(TN, Vmax, E, itemsize)
    vmem_limit = int(min(max(vmem_est * 5 // 4, 32 * 1024 * 1024), vmem_ceiling))

    # TODO(synk): for E < 128, packing 128//E tokens per output row would make
    # the output stores fully lane-dense; here we keep width E (no 128-padding).
    def run(table_pipeline_mode):
        if table_pipeline_mode is None:
            tab_spec = pl.BlockSpec((None, Vmax, E),
                                    lambda i, lang_ref: (lang_ref[0], 0, 0))
        else:
            # constant block index across the grid -> one resident copy suffices
            tab_spec = pl.BlockSpec((None, Vmax, E),
                                    lambda i, lang_ref: (lang_ref[0], 0, 0),
                                    pipeline_mode=table_pipeline_mode)
        return pl.pallas_call(
            _matmul_kernel,
            out_shape=jax.ShapeDtypeStruct((Np, E), dtype),
            grid_spec=pltpu.PrefetchScalarGridSpec(
                num_scalar_prefetch=1,
                grid=(G,),
                in_specs=[
                    pl.BlockSpec((TN, 1), lambda i, lang_ref: (i, 0)),
                    tab_spec,
                ],
                out_specs=pl.BlockSpec((TN, E), lambda i, lang_ref: (i, 0)),
            ),
            compiler_params=pltpu.CompilerParams(
                dimension_semantics=("parallel",),
                vmem_limit_bytes=vmem_limit),
        )(lang_arr, tok_col, tables)

    try:
        out_flat = run(pl.Buffered(1))
    except Exception:
        # fallback for Pallas versions without single-buffer pipeline mode
        out_flat = run(None)
    return out_flat[:N]


def _forward_gather(tokens, tables, lang_arr, N, L, Vmax, E, itemsize,
                    vmem_ceiling, min_tiles):
    dtype = tables.dtype
    # Keep row DMAs 32-bit granular: view sub-32-bit tables as packed uint32
    # rows.  (Store tables pre-packed to avoid this per-call bitcast when the
    # table is very large.)
    pack = 1
    gdtype = dtype
    tab = tables
    if itemsize < 4 and E % (4 // itemsize) == 0:
        pack = 4 // itemsize
        gdtype = jnp.uint32
        tab = lax.bitcast_convert_type(
            tables.reshape(L, Vmax, E // pack, pack), jnp.uint32)
    Ew = E // pack

    TN = min(512, _round_up(max(N, 1), 8))
    while min_tiles > 1 and TN > 8 and _cdiv(N, TN) < min_tiles:
        TN = max(8, _round_up(TN // 2, 8))
    Np = _round_up(max(N, 1), TN)
    G = Np // TN
    S = min(8, TN)                      # outstanding row DMAs per tile

    # TODO(synk): token ids live in SMEM via scalar prefetch; very large T*B
    # (>~256K tokens) would need chunked prefetch instead.
    tok_flat = jnp.zeros((Np,), jnp.int32).at[:N].set(
        tokens.reshape(N).astype(jnp.int32))

    erw = _round_up(Ew, 128)
    vmem_est = 2 * TN * erw * 4 + 2 * TN * erw * 4      # stage (2 slots) + out bufs
    vmem_limit = int(min(max(vmem_est * 2, 32 * 1024 * 1024), vmem_ceiling))

    out_flat = pl.pallas_call(
        functools.partial(_gather_kernel, tile_n=TN, n_out=S),
        out_shape=jax.ShapeDtypeStruct((Np, Ew), gdtype),
        grid_spec=pltpu.PrefetchScalarGridSpec(
            num_scalar_prefetch=2,
            grid=(G,),
            in_specs=[pl.BlockSpec(memory_space=pl.ANY)],   # table stays in HBM
            out_specs=pl.BlockSpec((TN, Ew), lambda i, lang_ref, tok_ref: (i, 0)),
            scratch_shapes=[
                pltpu.VMEM((2, TN, Ew), gdtype),
                pltpu.SemaphoreType.DMA((S,)),
            ],
        ),
        compiler_params=pltpu.CompilerParams(
            dimension_semantics=("parallel",),
            vmem_limit_bytes=vmem_limit),
    )(lang_arr, tok_flat, tab)

    out_flat = out_flat[:N]
    if pack > 1:
        out_flat = lax.bitcast_convert_type(out_flat, dtype).reshape(N, E)
    return out_flat


def multi_embedding_forward(tokens, stacked_tables, lang, *, force_gather=False):
    """Forward of MultiEmbedding: rows of table `lang` gathered at `tokens`.

    tokens:         int [T, B]
    stacked_tables: [L, Vmax, E] (per-language tables zero-padded to Vmax)
    lang:           scalar (python int / 0-d array) selecting the table
    returns:        [T, B, E] in stacked_tables.dtype
    """
    T, B = tokens.shape
    L, Vmax, E = stacked_tables.shape
    N = T * B
    itemsize = jnp.dtype(stacked_tables.dtype).itemsize

    vmem_cap, min_tiles, is_v5e = _device_info()
    vmem_budget = (vmem_cap * 3) // 4          # fitting target (Mosaic headroom)
    vmem_ceiling = (vmem_cap * 4) // 5         # never request more than 80% of VMEM

    lang_arr = jnp.asarray(lang, dtype=jnp.int32).reshape((1,))
    table_resident = _table_vmem_bytes(Vmax, E, itemsize)

    # The one-hot matmul loses to the HBM row-gather earlier on v5e
    # (weaker MXU vs HBM-BW ratio).
    matmul_max_vocab = 1024 if is_v5e else 4096
    use_gather = (force_gather
                  or Vmax > matmul_max_vocab
                  or (table_resident
                      + _matmul_tile_vmem_bytes(8, Vmax, E, itemsize)) > vmem_budget)

    if not use_gather:
        out2d = _forward_matmul(tokens, stacked_tables, lang_arr, N, Vmax, E,
                                itemsize, vmem_budget, vmem_ceiling, min_tiles,
                                table_resident)
    else:
        out2d = _forward_gather(tokens, stacked_tables, lang_arr, N, L, Vmax, E,
                                itemsize, vmem_ceiling, min_tiles)
    return out2d.reshape(T, B, E)


def build_stacked_tables(vocab_sizes, emb_size, padding_idx, key,
                         dtype=jnp.bfloat16):
    """Init per-language tables (~nn.Embedding N(0,1), padding_idx row zeroed),
    zero-pad to Vmax and stack into [L, Vmax, E].  Stored in bf16 by default so
    the resident-table path halves VMEM/HBM traffic (0/1 one-hot keeps the
    lookup exact)."""
    # TODO(synk): vocab_size <= 0 maps to nn.Identity() in the reference module;
    # that pass-through branch is not modeled here.
    L = len(vocab_sizes)
    vmax = max(vocab_sizes[i] for i in range(L))
    tabs = []
    for i in range(L):
        v = vocab_sizes[i]
        key, sub = jax.random.split(key)
        tab = jax.random.normal(sub, (v, emb_size), dtype=jnp.float32)
        if padding_idx is not None:
            tab = tab.at[padding_idx].set(0.0)
        if v < vmax:
            tab = jnp.concatenate(
                [tab, jnp.zeros((vmax - v, emb_size), jnp.float32)], axis=0)
        tabs.append(tab)
    return jnp.stack(tabs, axis=0).astype(dtype)   # [L, Vmax, E]


if __name__ == "__main__":
    key = jax.random.PRNGKey(0)

    vocab_sizes = {0: 32, 1: 48}   # dict idx -> vocab size
    emb_size = 32
    padding_idx = 1
    T, B = 8, 2
    lang = 1

    stacked = build_stacked_tables(vocab_sizes, emb_size, padding_idx, key)

    key, k1 = jax.random.split(key)
    tokens = jax.random.randint(
        k1, (T, B), 0, vocab_sizes[lang], dtype=jnp.int32)
    out = jax.block_until_ready(multi_embedding_forward(tokens, stacked, lang))
    ref = jnp.take(stacked[lang], tokens, axis=0)
    assert out.shape == (T, B, emb_size)
    assert jnp.array_equal(out.astype(jnp.float32), ref.astype(jnp.float32))

    # multi-tile, resident-table (matmul) path
    T2, B2 = 96, 4
    key, k2 = jax.random.split(key)
    tokens2 = jax.random.randint(
        k2, (T2, B2), 0, vocab_sizes[0], dtype=jnp.int32)
    out2 = jax.block_until_ready(multi_embedding_forward(tokens2, stacked, 0))
    ref2 = jnp.take(stacked[0], tokens2, axis=0)
    assert out2.shape == (T2, B2, emb_size)
    assert jnp.array_equal(out2.astype(jnp.float32), ref2.astype(jnp.float32))

    # exercise the HBM row-gather (large-vocab) path on the same data
    out3 = jax.block_until_ready(
        multi_embedding_forward(tokens2, stacked, 0, force_gather=True))
    assert out3.shape == (T2, B2, emb_size)
    assert jnp.array_equal(out3.astype(jnp.float32), ref2.astype(jnp.float32))

    print("KERNEL_OK")
</pallas_src>

<mosaic_0001>
module attributes {stable_mosaic.version = 11 : i64} {
  func.func @_matmul_kernel(%arg0: i32, %arg1: memref<1xi32, #tpu.memory_space<smem>>, %arg2: memref<16x1xi32, #tpu.memory_space<vmem>>, %arg3: memref<1x48x32xbf16, #tpu.memory_space<vmem>>, %arg4: memref<16x32xbf16, #tpu.memory_space<vmem>>) attributes {dimension_semantics = [#tpu.dimension_semantics<parallel>], iteration_bounds = array<i64: 1>, scalar_prefetch = 1 : i64, scratch_operands = 0 : i64, tpu.core_type = #tpu.core_type<tc>, window_params = [{transform_indices = @transform_0, window_bounds = array<i64: 16, 1>}, {pipeline_mode = #tpu.pipeline_mode<synchronous>, transform_indices = @transform_1, window_bounds = array<i64: 1, 48, 32>}, {transform_indices = @transform_2, window_bounds = array<i64: 16, 32>}]} {
    %c0 = arith.constant 0 : index
    %c0_0 = arith.constant 0 : index
    %0 = vector.load %arg2[%c0, %c0_0] : memref<16x1xi32, #tpu.memory_space<vmem>>, vector<16x1xi32>
    %c0_1 = arith.constant 0 : index
    %c0_2 = arith.constant 0 : index
    %c0_3 = arith.constant 0 : index
    %1 = vector.load %arg3[%c0_1, %c0_2, %c0_3] : memref<1x48x32xbf16, #tpu.memory_space<vmem>>, vector<1x48x32xbf16>
    %2 = vector.shape_cast %1 : vector<1x48x32xbf16> to vector<48x32xbf16>
    %3 = tpu.iota {dimensions = array<i32: 1>} : vector<16x48xi32>
    %4 = vector.broadcast %0 : vector<16x1xi32> to vector<16x48xi32>
    %5 = arith.cmpi eq, %3, %4 : vector<16x48xi32>
    %6 = arith.extui %5 : vector<16x48xi1> to vector<16x48xi32>
    %7 = arith.sitofp %6 : vector<16x48xi32> to vector<16x48xf32>
    %8 = arith.truncf %7 : vector<16x48xf32> to vector<16x48xbf16>
    %cst = arith.constant dense<0.000000e+00> : vector<16x32xf32>
    %9 = tpu.matmul %8, %2, %cst {dimension_numbers = #tpu.dot_dimension_numbers<[1], [0], [0], [1], [0, 0, 1, 1], [], []>} : vector<16x48xbf16>, vector<48x32xbf16>, vector<16x32xf32> -> vector<16x32xf32>
    %10 = arith.truncf %9 : vector<16x32xf32> to vector<16x32xbf16>
    %c0_4 = arith.constant 0 : index
    %c0_5 = arith.constant 0 : index
    %11 = vector.load %arg4[%c0_4, %c0_5] : memref<16x32xbf16, #tpu.memory_space<vmem>>, vector<16x32xbf16>
    tpu.vector_store %arg4[%c0_4, %c0_5], %10 {strides = array<i32>} : memref<16x32xbf16, #tpu.memory_space<vmem>>, vector<16x32xbf16>,
    return
  }
  func.func @transform_0(%arg0: i32, %arg1: memref<1xi32, #tpu.memory_space<smem>>) -> (i32, i32) {
    %c0_i32 = arith.constant 0 : i32
    %c0_i32_0 = arith.constant 0 : i32
    return %arg0, %c0_i32 : i32, i32
  }
  func.func @transform_1(%arg0: i32, %arg1: memref<1xi32, #tpu.memory_space<smem>>) -> (i32, i32, i32) {
    %c0 = arith.constant 0 : index
    %0 = memref.load %arg1[%c0] : memref<1xi32, #tpu.memory_space<smem>>
    %c0_i32 = arith.constant 0 : i32
    %c0_i32_0 = arith.constant 0 : i32
    %c0_i32_1 = arith.constant 0 : i32
    return %0, %c0_i32, %c0_i32_0 : i32, i32, i32
  }
  func.func @transform_2(%arg0: i32, %arg1: memref<1xi32, #tpu.memory_space<smem>>) -> (i32, i32) {
    %c0_i32 = arith.constant 0 : i32
    %c0_i32_0 = arith.constant 0 : i32
    return %arg0, %c0_i32 : i32, i32
  }
}

module attributes {stable_mosaic.version = 11 : i64} {
  func.func @_matmul_kernel(%arg0: i32, %arg1: memref<1xi32, #tpu.memory_space<smem>>, %arg2: memref<16x1xi32, #tpu.memory_space<vmem>>, %arg3: memref<1x48x32xbf16, #tpu.memory_space<vmem>>, %arg4: memref<16x32xbf16, #tpu.memory_space<vmem>>) attributes {dimension_semantics = [#tpu.dimension_semantics<parallel>], iteration_bounds = array<i64: 1>, scalar_prefetch = 1 : i64, scratch_operands = 0 : i64, tpu.core_type = #tpu.core_type<tc>, window_params = [{transform_indices = @transform_0, window_bounds = array<i64: 16, 1>}, {transform_indices = @transform_1, window_bounds = array<i64: 1, 48, 32>}, {transform_indices = @transform_2, window_bounds = array<i64: 16, 32>}]} {
    %c0 = arith.constant 0 : index
    %c0_0 = arith.constant 0 : index
    %0 = vector.load %arg2[%c0, %c0_0] : memref<16x1xi32, #tpu.memory_space<vmem>>, vector<16x1xi32>
    %c0_1 = arith.constant 0 : index
    %c0_2 = arith.constant 0 : index
    %c0_3 = arith.constant 0 : index
    %1 = vector.load %arg3[%c0_1, %c0_2, %c0_3] : memref<1x48x32xbf16, #tpu.memory_space<vmem>>, vector<1x48x32xbf16>
    %2 = vector.shape_cast %1 : vector<1x48x32xbf16> to vector<48x32xbf16>
    %3 = tpu.iota {dimensions = array<i32: 1>} : vector<16x48xi32>
    %4 = vector.broadcast %0 : vector<16x1xi32> to vector<16x48xi32>
    %5 = arith.cmpi eq, %3, %4 : vector<16x48xi32>
    %6 = arith.extui %5 : vector<16x48xi1> to vector<16x48xi32>
    %7 = arith.sitofp %6 : vector<16x48xi32> to vector<16x48xf32>
    %8 = arith.truncf %7 : vector<16x48xf32> to vector<16x48xbf16>
    %cst = arith.constant dense<0.000000e+00> : vector<16x32xf32>
    %9 = tpu.matmul %8, %2, %cst {dimension_numbers = #tpu.dot_dimension_numbers<[1], [0], [0], [1], [0, 0, 1, 1], [], []>} : vector<16x48xbf16>, vector<48x32xbf16>, vector<16x32xf32> -> vector<16x32xf32>
    %10 = arith.truncf %9 : vector<16x32xf32> to vector<16x32xbf16>
    %c0_4 = arith.constant 0 : index
    %c0_5 = arith.constant 0 : index
    %11 = vector.load %arg4[%c0_4, %c0_5] : memref<16x32xbf16, #tpu.memory_space<vmem>>, vector<16x32xbf16>
    tpu.vector_store %arg4[%c0_4, %c0_5], %10 {strides = array<i32>} : memref<16x32xbf16, #tpu.memory_space<vmem>>, vector<16x32xbf16>,
    return
  }
  func.func @transform_0(%arg0: i32, %arg1: memref<1xi32, #tpu.memory_space<smem>>) -> (i32, i32) {
    %c0_i32 = arith.constant 0 : i32
    %c0_i32_0 = arith.constant 0 : i32
    return %arg0, %c0_i32 : i32, i32
  }
  func.func @transform_1(%arg0: i32, %arg1: memref<1xi32, #tpu.memory_space<smem>>) -> (i32, i32, i32) {
    %c0 = arith.constant 0 : index
    %0 = memref.load %arg1[%c0] : memref<1xi32, #tpu.memory_space<smem>>
    %c0_i32 = arith.constant 0 : i32
    %c0_i32_0 = arith.constant 0 : i32
    %c0_i32_1 = arith.constant 0 : i32
    return %0, %c0_i32, %c0_i32_0 : i32, i32, i32
  }
  func.func @transform_2(%arg0: i32, %arg1: memref<1xi32, #tpu.memory_space<smem>>) -> (i32, i32) {
    %c0_i32 = arith.constant 0 : i32
    %c0_i32_0 = arith.constant 0 : i32
    return %arg0, %c0_i32 : i32, i32
  }
}

</mosaic_0001>

<llo_original>
// kernel: tpu_custom_call.1
$region0: #{tpu_custom_call.1}
  #allocation0 [shape = 'u32[]', space=smem, size = 0x4, offset = 0x4, fixed_abs, tag = 'smem constant byte address 0x4 - core index']
  #allocation1 [shape = 'u32[72,128]{1,0:T(1,128)}', space=vmem, size = 0x9000, scoped, tag = 'internal scratch']
  #allocation2 [shape = 's32[1]{0}', space=sflag, size = 0x4, scoped, tag = 'scoped memory for tpu_custom_call.1']
  #allocation3 [shape = 's32[1]{0:T(128)S(6)}', space=smem, size = 0x200, scoped, tag = 'prefetched SMEM operand 0']
  %s0 = inlined_call_operand.<no memory space> [shape: s32[1], index: 0, kind: input, shape index: {}]
  %s1 = inlined_call_operand.vmem [shape: s32[16,1], index: 1, kind: input, shape index: {}]
  %s2 = inlined_call_operand.vmem [shape: bf16[2,48,32], index: 2, kind: input, shape index: {}]
  %s3 = inlined_call_operand.hbm [shape: bf16[16,32], index: 3, kind: output, shape index: {}]
  %s4 = sld [smem:[#allocation0]]
  $region18: #{tpu_custom_call.1} parent=0
    _
  %s6 = ssub.s32 1, %s4
  %s7 = scalar_select 0, %s6, %s4
  %8 = sst [smem:[#allocation3]] %s0
  $region1: #{tpu_custom_call.1} parent=0
    #allocation4 [shape = 'u8[4096]{0}', space=vmem, size = 0x1000, scoped, tag = 'output window, operand 0, single buffered']
    #allocation5 [shape = 's32[1]{0}', space=sflag, size = 0x4, scoped, tag = 'scoped memory for tpu_custom_call.1']
    %9 = vsyncpa [#allocation5], 0
    // Predicated region
    $region2: #{tpu_custom_call.1} parent=1 // pred_check
      _
    $region3: #{tpu_custom_call.1} parent=1 // pred_check_branch
      %11 = sbr.rel (0) target = $region5
    $region4: #{tpu_custom_call.1} parent=1 // pred_region
      _
    $region5: #{tpu_custom_call.1} parent=1 // pred_fallthru
      _
    // Predicated region
    $region6: #{tpu_custom_call.1} parent=1 // pred_check
      _
    $region7: #{tpu_custom_call.1} parent=1 // pred_check_branch
      %13 = sbr.rel (0) target = $region9
    $region8: #{tpu_custom_call.1} parent=1 // pred_region
      %s14 = sld [smem:[#allocation3]]
      %p15 = scmp.lt.s32.totalorder %s14, 1
      %s16 = scalar_select %p15, %s14, 1
      %s17 = smul.addr %s16, 6
      %s18 = smul.addr %s17, 4
      %s19 = scalar_lea.vmem %s2, %s18
      %s20 = sld [smem:[#allocation3]]
    $region9: #{tpu_custom_call.1} parent=1 // pred_fallthru
      _
    %s21 = sld [smem:[#allocation3]]
    %p22 = scmp.lt.s32.totalorder %s21, 1
    %s23 = scalar_select %p22, %s21, 1
    %s24 = smul.addr %s23, 6
    %s25 = smul.addr %s24, 4
    %s26 = scalar_lea.vmem %s2, %s25
    %s27 = sld [smem:[#allocation3]]
    %p28 = scmp.lt.s32.totalorder %s27, 1
    %s29 = scalar_select %p28, %s27, 1
    %s30 = smul.addr %s29, 6
    %s31 = smul.addr %s30, 4
    %s32 = scalar_lea.vmem %s2, %s31
    %s33 = sld [smem:[#allocation3]]
    %v35 = vld [vmem:[%s1] sm:$0xff]
    %v36 = vld [vmem:[%s1 + $0x8] sm:$0xff]
    %v37 = vld [vmem:[%s32] sm:$0xf]
    %v38 = vld [vmem:[%s32 + $0x4] sm:$0xf]
    %v39 = vld [vmem:[%s32 + $0x8] sm:$0xf]
    %v40 = vld [vmem:[%s32 + $0xc] sm:$0xf]
    %v41 = vld [vmem:[%s32 + $0x10] sm:$0xf]
    %v42 = vld [vmem:[%s32 + $0x14] sm:$0xf]
    %v43 = vlaneseq
    %v44 = vand.u32 %v43, 127
    %45 = vset.pattern.permute.xlu0 0
    %46 = vperm.xlu0 %45, %v35
    %v47 = vpop.permute.xlu0 %46
    %48 = vset.pattern.permute.xlu0 0
    %49 = vperm.xlu0 %48, %v36
    %v50 = vpop.permute.xlu0 %49
    %vm51 = vcmp.eq.s32.totalorder %v44, %v47
    %vm52 = vcmp.eq.s32.totalorder %v44, %v50
    %v53 = vsel %vm51, 1, 0
    %v54 = vsel %vm52, 1, 0
    %v55 = vcvt.s32.f32 %v53
    %v56 = vcvt.s32.f32 %v54
    %v57 = vpack.c.bf16 %v56, %v55
    %v64 = vunpack.c.l.b16 %v37
    %v65 = vunpack.c.l.b16 %v38
    %v66 = vunpack.c.l.b16 %v39
    %v67 = vunpack.c.l.b16 %v40
    %v68 = vunpack.c.l.b16 %v41
    %v69 = vunpack.c.l.b16 %v42
    %v70 = vpack.c.b16 %v65, %v64
    %v71 = vpack.c.b16 %v67, %v66
    %v72 = vpack.c.b16 %v69, %v68
    %vm76 = vcmask 392192
    %v78 = vsel %vm76, %v57, 0
    %80 = vmatpush.bf16.msra.mxu0 0
    %81 = vmatpush.bf16.msra.mxu0 0
    %82 = vmatpush.bf16.msra.mxu0 0
    %83 = vmatpush.bf16.msra.mxu0 0
    %84 = vmatpush.bf16.msra.mxu0 0
    %85 = vmatpush.bf16.msra.mxu0 %v72
    %86 = vmatpush.bf16.msra.mxu0 %v71
    %87 = vmatpush.bf16.msra.mxu0 %v70
    %88 = vmatmul.bf16.gmra.mxu0 %v78
    %v89 = vpop.f32.mrf.mxu0
    %v90 = vadd.f32 0.0, %v89
    %v91 = vpop.f32.mrf.mxu0
    %v92 = vadd.f32 0.0, %v91
    %93 = vdwg.mxu0
    %v94 = vpack.c.bf16 %v90, %v90
    %v95 = vpack.c.bf16 %v92, %v92
    %vm96 = vcmask 257024
    %97 = vst.msk [vmem:[#allocation4] sm:$0xf] %vm96, %v94
    %98 = vst.msk [vmem:[#allocation4 + $0x4] sm:$0xf] %vm96, %v95
    // Predicated region
    $region10: #{tpu_custom_call.1} parent=1 // pred_check
      _
    $region11: #{tpu_custom_call.1} parent=1 // pred_check_branch
      %100 = sbr.rel (0) target = $region13
    $region12: #{tpu_custom_call.1} parent=1 // pred_region
      %102 = vsyncadd [#allocation5], 0
      %s103 = sshll.u32 [#allocation4], 4
      %s104 = int_to_ptr.vmem [resolvable:$true] %s103
      %s105 = sshll.u32 %s3, 4
      %s106 = int_to_ptr.hbm [resolvable:$true] %s105
      %111 = dma.vmem_to_hbm [thread:$0]  %s104, 128, %s106, [#allocation5], 64, 64, 4
    $region13: #{tpu_custom_call.1} parent=1 // pred_fallthru
      _
    // Predicated region
    $region14: #{tpu_custom_call.1} parent=1 // pred_check
      _
    $region15: #{tpu_custom_call.1} parent=1 // pred_check_branch
      %113 = sbr.rel (0) target = $region17
    $region16: #{tpu_custom_call.1} parent=1 // pred_region
      %115 = dma.done [#allocation5], 128
    $region17: #{tpu_custom_call.1} parent=1 // pred_fallthru
      _
    %116 = vsyncpa [#allocation5], 1

// kernel: tpu_custom_call.1
$region0: #{tpu_custom_call.1}
  #allocation0 [shape = 'u32[]', space=smem, size = 0x4, offset = 0x4, fixed_abs, tag = 'smem constant byte address 0x4 - core index']
  #allocation1 [shape = 'u32[72,128]{1,0:T(1,128)}', space=vmem, size = 0x9000, scoped, tag = 'internal scratch']
  #allocation2 [shape = 's32[1]{0}', space=sflag, size = 0x4, scoped, tag = 'scoped memory for tpu_custom_call.1']
  #allocation3 [shape = 's32[1]{0:T(128)S(6)}', space=smem, size = 0x200, scoped, tag = 'prefetched SMEM operand 0']
  %s0 = inlined_call_operand.<no memory space> [shape: s32[1], index: 0, kind: input, shape index: {}]
  %s1 = inlined_call_operand.vmem [shape: s32[16,1], index: 1, kind: input, shape index: {}]
  %s2 = inlined_call_operand.vmem [shape: bf16[2,48,32], index: 2, kind: input, shape index: {}]
  %s3 = inlined_call_operand.hbm [shape: bf16[16,32], index: 3, kind: output, shape index: {}]
  %s4 = sld [smem:[#allocation0]]
  $region18: #{tpu_custom_call.1} parent=0
    _
  %s6 = ssub.s32 1, %s4
  %s7 = scalar_select 0, %s6, %s4
  %8 = sst [smem:[#allocation3]] %s0
  $region1: #{tpu_custom_call.1} parent=0
    #allocation4 [shape = 'u8[4096]{0}', space=vmem, size = 0x1000, scoped, tag = 'output window, operand 0, single buffered']
    #allocation5 [shape = 's32[1]{0}', space=sflag, size = 0x4, scoped, tag = 'scoped memory for tpu_custom_call.1']
    %9 = vsyncpa [#allocation5], 0
    // Predicated region
    $region2: #{tpu_custom_call.1} parent=1 // pred_check
      _
    $region3: #{tpu_custom_call.1} parent=1 // pred_check_branch
      %11 = sbr.rel (0) target = $region5
    $region4: #{tpu_custom_call.1} parent=1 // pred_region
      _
    $region5: #{tpu_custom_call.1} parent=1 // pred_fallthru
      _
    // Predicated region
    $region6: #{tpu_custom_call.1} parent=1 // pred_check
      _
    $region7: #{tpu_custom_call.1} parent=1 // pred_check_branch
      %13 = sbr.rel (0) target = $region9
    $region8: #{tpu_custom_call.1} parent=1 // pred_region
      %s14 = sld [smem:[#allocation3]]
      %p15 = scmp.lt.s32.totalorder %s14, 1
      %s16 = scalar_select %p15, %s14, 1
      %s17 = smul.addr %s16, 6
      %s18 = smul.addr %s17, 4
      %s19 = scalar_lea.vmem %s2, %s18
      %s20 = sld [smem:[#allocation3]]
    $region9: #{tpu_custom_call.1} parent=1 // pred_fallthru
      _
    %s21 = sld [smem:[#allocation3]]
    %p22 = scmp.lt.s32.totalorder %s21, 1
    %s23 = scalar_select %p22, %s21, 1
    %s24 = smul.addr %s23, 6
    %s25 = smul.addr %s24, 4
    %s26 = scalar_lea.vmem %s2, %s25
    %s27 = sld [smem:[#allocation3]]
    %p28 = scmp.lt.s32.totalorder %s27, 1
    %s29 = scalar_select %p28, %s27, 1
    %s30 = smul.addr %s29, 6
    %s31 = smul.addr %s30, 4
    %s32 = scalar_lea.vmem %s2, %s31
    %s33 = sld [smem:[#allocation3]]
    %v35 = vld [vmem:[%s1] sm:$0xff]
    %v36 = vld [vmem:[%s1 + $0x8] sm:$0xff]
    %v37 = vld [vmem:[%s32] sm:$0xf]
    %v38 = vld [vmem:[%s32 + $0x4] sm:$0xf]
    %v39 = vld [vmem:[%s32 + $0x8] sm:$0xf]
    %v40 = vld [vmem:[%s32 + $0xc] sm:$0xf]
    %v41 = vld [vmem:[%s32 + $0x10] sm:$0xf]
    %v42 = vld [vmem:[%s32 + $0x14] sm:$0xf]
    %v43 = vlaneseq
    %v44 = vand.u32 %v43, 127
    %45 = vset.pattern.permute.xlu0 0
    %46 = vperm.xlu0 %45, %v35
    %v47 = vpop.permute.xlu0 %46
    %48 = vset.pattern.permute.xlu0 0
    %49 = vperm.xlu0 %48, %v36
    %v50 = vpop.permute.xlu0 %49
    %vm51 = vcmp.eq.s32.totalorder %v44, %v47
    %vm52 = vcmp.eq.s32.totalorder %v44, %v50
    %v53 = vsel %vm51, 1, 0
    %v54 = vsel %vm52, 1, 0
    %v55 = vcvt.s32.f32 %v53
    %v56 = vcvt.s32.f32 %v54
    %v57 = vpack.c.bf16 %v56, %v55
    %v64 = vunpack.c.l.b16 %v37
    %v65 = vunpack.c.l.b16 %v38
    %v66 = vunpack.c.l.b16 %v39
    %v67 = vunpack.c.l.b16 %v40
    %v68 = vunpack.c.l.b16 %v41
    %v69 = vunpack.c.l.b16 %v42
    %v70 = vpack.c.b16 %v65, %v64
    %v71 = vpack.c.b16 %v67, %v66
    %v72 = vpack.c.b16 %v69, %v68
    %vm76 = vcmask 392192
    %v78 = vsel %vm76, %v57, 0
    %80 = vmatpush.bf16.msra.mxu0 0
    %81 = vmatpush.bf16.msra.mxu0 0
    %82 = vmatpush.bf16.msra.mxu0 0
    %83 = vmatpush.bf16.msra.mxu0 0
    %84 = vmatpush.bf16.msra.mxu0 0
    %85 = vmatpush.bf16.msra.mxu0 %v72
    %86 = vmatpush.bf16.msra.mxu0 %v71
    %87 = vmatpush.bf16.msra.mxu0 %v70
    %88 = vmatmul.bf16.gmra.mxu0 %v78
    %v89 = vpop.f32.mrf.mxu0
    %v90 = vadd.f32 0.0, %v89
    %v91 = vpop.f32.mrf.mxu0
    %v92 = vadd.f32 0.0, %v91
    %93 = vdwg.mxu0
    %v94 = vpack.c.bf16 %v90, %v90
    %v95 = vpack.c.bf16 %v92, %v92
    %vm96 = vcmask 257024
    %97 = vst.msk [vmem:[#allocation4] sm:$0xf] %vm96, %v94
    %98 = vst.msk [vmem:[#allocation4 + $0x4] sm:$0xf] %vm96, %v95
    // Predicated region
    $region10: #{tpu_custom_call.1} parent=1 // pred_check
      _
    $region11: #{tpu_custom_call.1} parent=1 // pred_check_branch
      %100 = sbr.rel (0) target = $region13
    $region12: #{tpu_custom_call.1} parent=1 // pred_region
      %102 = vsyncadd [#allocation5], 0
      %s103 = sshll.u32 [#allocation4], 4
      %s104 = int_to_ptr.vmem [resolvable:$true] %s103
      %s105 = sshll.u32 %s3, 4
      %s106 = int_to_ptr.hbm [resolvable:$true] %s105
      %111 = dma.vmem_to_hbm [thread:$0]  %s104, 128, %s106, [#allocation5], 64, 64, 4
    $region13: #{tpu_custom_call.1} parent=1 // pred_fallthru
      _
    // Predicated region
    $region14: #{tpu_custom_call.1} parent=1 // pred_check
      _
    $region15: #{tpu_custom_call.1} parent=1 // pred_check_branch
      %113 = sbr.rel (0) target = $region17
    $region16: #{tpu_custom_call.1} parent=1 // pred_region
      %115 = dma.done [#allocation5], 128
    $region17: #{tpu_custom_call.1} parent=1 // pred_fallthru
      _
    %116 = vsyncpa [#allocation5], 1

</llo_original>
